<compile_context>
chip_gen: v5e
topology: v5e:2x2
jax: 0.10.0
libtpu: 0.0.40
codegen_flags: <defaults>
</compile_context>

<pallas_src>
import jax
import jax.numpy as jnp
from jax.experimental import pallas as pl
from jax.experimental.pallas import tpu as pltpu


def _round_up(x, m):
    return ((x + m - 1) // m) * m


def _splade_kernel(h_ref, m_ref, w_ref, b_ref, o_ref):
    """One (batch-chunk, vocab-tile) block.

    h_ref: (bc*S, H)  hidden states, flattened over (batch, seq)
    m_ref: (bc*S, 1)  additive mask: 0 for real tokens, -1e30 for masked/padded
    w_ref: (H, tv)    vocab-projection weight tile
    b_ref: (1, tv)    bias tile (f32)
    o_ref: (bc, tv)   out = max_s( log1p(relu(h @ W + b)) * mask )
    """
    bc, tv = o_ref.shape
    s = h_ref.shape[0] // bc

    # Single MXU pass (M = bc*S), f32 accumulation.
    scores = jnp.dot(h_ref[...], w_ref[...], preferred_element_type=jnp.float32)
    # Additive mask: one VALU add per element, broadcast along lanes.
    masked = scores + m_ref[...].astype(jnp.float32)
    # Segment max over the sequence axis (sublane split, lane dim untouched).
    mx = jnp.max(masked.reshape(bc, s, tv), axis=1)                    # (bc, tv)
    # Deferred epilogue: max_s log1p(relu(x_s + b)) == log1p(relu(max_s x_s + b)).
    o_ref[...] = jnp.log1p(jnp.maximum(mx + b_ref[...], 0.0)).astype(o_ref.dtype)


def splade_pool(hidden, w_vocab, b_vocab, attn_mask, *, tv=512):
    """SPLADE pooling: max_s( log1p(relu(hidden @ W + b)) * mask ) -> [B, V] f32.

    hidden:    [B, S, H]  (bf16 recommended; f32 works)
    w_vocab:   [H, V]
    b_vocab:   [V]
    attn_mask: [B, S]     (binary 0/1)
    """
    B, S, H = hidden.shape
    V = w_vocab.shape[1]
    in_bytes = jnp.dtype(hidden.dtype).itemsize

    # Lane-dense vocab tiles; pad V up to a multiple of tv.
    tv = max(128, min(tv, _round_up(V, 128)))
    Vp = _round_up(V, tv)

    # Pad S to a sublane multiple; padded rows are excluded via the additive mask.
    Sp = _round_up(S, 8)

    # ---- generation-aware VMEM budget -> batch-chunk size bc ----
    try:
        vmem_cap = int(pltpu.get_tpu_info().vmem_capacity_bytes)
    except Exception:
        vmem_cap = 64 * 1024 * 1024          # conservative fallback (v7x: 64 MiB/TC)
    budget = int(vmem_cap * 0.7)

    def vmem_cost(bc):
        hid = 2 * bc * Sp * H * in_bytes     # hidden block, double-buffered
        msk = 2 * bc * Sp * 128 * 2          # bf16 additive mask (lane-padded to 128)
        wt = 2 * H * tv * in_bytes           # W tile, double-buffered
        bia = 2 * 8 * tv * 4                 # bias tile (sublane-padded)
        acc = 2 * bc * Sp * tv * 4           # f32 scores / masked intermediates
        out = 2 * max(bc, 8) * tv * 4        # output block
        return hid + msk + wt + bia + acc + out

    if B <= 8 or vmem_cost(B) <= budget:
        bc, Bp = B, B                        # hidden fully resident; W streamed once
    else:
        bc = 8
        for cand in range((B // 8) * 8, 7, -8):
            if vmem_cost(cand) <= budget:
                bc = cand
                break
        Bp = _round_up(B, bc)

    # ---- wrapper-side padding / layout plumbing ----
    w_p = w_vocab if Vp == V else jnp.pad(w_vocab, ((0, 0), (0, Vp - V)))
    b_p = b_vocab.astype(jnp.float32)
    b_p = (b_p if Vp == V else jnp.pad(b_p, (0, Vp - V))).reshape(1, Vp)

    h_p = jnp.pad(hidden, ((0, Bp - B), (0, Sp - S), (0, 0)))
    h2d = h_p.reshape(Bp * Sp, H)            # flatten (batch, seq) -> MXU M axis

    madd = (attn_mask.astype(jnp.float32) - 1.0) * 1e30   # 0 real, -1e30 masked
    madd = jnp.pad(madd, ((0, Bp - B), (0, Sp - S)), constant_values=-1e30)
    madd = madd.reshape(Bp * Sp, 1).astype(jnp.bfloat16)

    # Batch OUTER, vocab INNER: hidden's block index only depends on the outer
    # axis, so it stays VMEM-resident across the whole vocab sweep.
    grid = (Bp // bc, Vp // tv)

    vmem_limit = int(min(int(vmem_cap * 0.9),
                         max(32 * 1024 * 1024, vmem_cost(bc) + (8 << 20))))

    out = pl.pallas_call(
        _splade_kernel,
        out_shape=jax.ShapeDtypeStruct((Bp, Vp), jnp.float32),
        grid_spec=pltpu.PrefetchScalarGridSpec(
            num_scalar_prefetch=0,
            grid=grid,
            in_specs=[
                pl.BlockSpec((bc * Sp, H), lambda i, j: (i, 0)),   # hidden (resident over j)
                pl.BlockSpec((bc * Sp, 1), lambda i, j: (i, 0)),   # additive mask
                pl.BlockSpec((H, tv),      lambda i, j: (0, j)),   # W tile (streamed)
                pl.BlockSpec((1, tv),      lambda i, j: (0, j)),   # bias tile
            ],
            out_specs=pl.BlockSpec((bc, tv), lambda i, j: (i, j)),
        ),
        compiler_params=pltpu.CompilerParams(
            # Only the vocab axis is core-parallel: on v7x the two TCs split
            # vocab tiles, so W_vocab is streamed once chip-wide.
            dimension_semantics=("arbitrary", "parallel"),
            vmem_limit_bytes=vmem_limit),
    )(h2d, madd, w_p, b_p)

    return out[:B, :V]


def tiny_encoder(token_ids, emb, w_h, b_h):
    # TODO(synk): the pretrained AutoModelForMaskedLM body has no clean Pallas
    # equivalent here; a tiny embedding + dense + gelu stands in (plain JAX).
    x = emb[token_ids]                 # [B, S, H]
    x = jax.nn.gelu(x @ w_h + b_h)     # [B, S, H]
    return x


def splade_forward(token_ids, attn_mask, params, *, compute_dtype=jnp.bfloat16):
    hidden = tiny_encoder(token_ids, params["emb"], params["w_h"], params["b_h"])
    return splade_pool(hidden.astype(compute_dtype),
                       params["w_vocab"].astype(compute_dtype),
                       params["b_vocab"], attn_mask)


def _reference(token_ids, attn_mask, params, *, compute_dtype=jnp.bfloat16):
    # Same bf16 rounding of hidden / W as the kernel path, f32 accumulation.
    hidden = tiny_encoder(token_ids, params["emb"], params["w_h"], params["b_h"])
    hidden = hidden.astype(compute_dtype).astype(jnp.float32)
    w = params["w_vocab"].astype(compute_dtype).astype(jnp.float32)
    logits = hidden @ w + params["b_vocab"]                              # [B,S,V]
    vals = jnp.log1p(jnp.maximum(logits, 0.0)) * attn_mask[..., None].astype(jnp.float32)
    return jnp.max(vals, axis=1)                                          # [B,V]


if __name__ == "__main__":
    B, S, H, V = 2, 16, 32, 256

    key = jax.random.PRNGKey(0)
    k_emb, k_wh, k_wv, k_tok = jax.random.split(key, 4)

    params = {
        "emb":     jax.random.normal(k_emb, (V, H), jnp.float32) * 0.1,
        "w_h":     jax.random.normal(k_wh, (H, H), jnp.float32) * 0.1,
        "b_h":     jnp.zeros((H,), jnp.float32),
        "w_vocab": jax.random.normal(k_wv, (H, V), jnp.float32) * 0.1,
        "b_vocab": jnp.linspace(-0.5, 0.5, V, dtype=jnp.float32),
    }

    token_ids = jax.random.randint(k_tok, (B, S), 0, V, dtype=jnp.int32)
    # batch 0 fully attended, batch 1 has padding at the tail
    attn_mask = jnp.stack([
        jnp.ones((S,), jnp.int32),
        jnp.concatenate([jnp.ones((S - 6,), jnp.int32), jnp.zeros((6,), jnp.int32)]),
    ])

    out = jax.jit(splade_forward)(token_ids, attn_mask, params)
    out = jax.block_until_ready(out)

    ref = _reference(token_ids, attn_mask, params)
    assert out.shape == (B, V)
    assert jnp.allclose(out, ref, atol=2e-4, rtol=2e-4), float(jnp.max(jnp.abs(out - ref)))

    print("KERNEL_OK")
</pallas_src>

<mosaic_0001>
module attributes {stable_mosaic.version = 11 : i64} {
  func.func @_splade_kernel(%arg0: i32, %arg1: i32, %arg2: memref<32x32xbf16, #tpu.memory_space<vmem>>, %arg3: memref<32x1xbf16, #tpu.memory_space<vmem>>, %arg4: memref<32x256xbf16, #tpu.memory_space<vmem>>, %arg5: memref<1x256xf32, #tpu.memory_space<vmem>>, %arg6: memref<2x256xf32, #tpu.memory_space<vmem>>) attributes {dimension_semantics = [#tpu.dimension_semantics<arbitrary>, #tpu.dimension_semantics<parallel>], iteration_bounds = array<i64: 1, 1>, scalar_prefetch = 0 : i64, scratch_operands = 0 : i64, tpu.core_type = #tpu.core_type<tc>, window_params = [{transform_indices = @transform_0, window_bounds = array<i64: 32, 32>}, {transform_indices = @transform_1, window_bounds = array<i64: 32, 1>}, {transform_indices = @transform_2, window_bounds = array<i64: 32, 256>}, {transform_indices = @transform_3, window_bounds = array<i64: 1, 256>}, {transform_indices = @transform_4, window_bounds = array<i64: 2, 256>}]} {
    %c0 = arith.constant 0 : index
    %c0_0 = arith.constant 0 : index
    %0 = vector.load %arg2[%c0, %c0_0] : memref<32x32xbf16, #tpu.memory_space<vmem>>, vector<32x32xbf16>
    %c0_1 = arith.constant 0 : index
    %c0_2 = arith.constant 0 : index
    %1 = vector.load %arg4[%c0_1, %c0_2] : memref<32x256xbf16, #tpu.memory_space<vmem>>, vector<32x256xbf16>
    %cst = arith.constant dense<0.000000e+00> : vector<32x256xf32>
    %2 = tpu.matmul %0, %1, %cst {dimension_numbers = #tpu.dot_dimension_numbers<[1], [0], [0], [1], [0, 0, 1, 1], [], []>} : vector<32x32xbf16>, vector<32x256xbf16>, vector<32x256xf32> -> vector<32x256xf32>
    %c0_3 = arith.constant 0 : index
    %c0_4 = arith.constant 0 : index
    %3 = vector.load %arg3[%c0_3, %c0_4] : memref<32x1xbf16, #tpu.memory_space<vmem>>, vector<32x1xbf16>
    %4 = arith.extf %3 : vector<32x1xbf16> to vector<32x1xf32>
    %5 = vector.broadcast %4 : vector<32x1xf32> to vector<32x256xf32>
    %6 = arith.addf %2, %5 : vector<32x256xf32>
    %7 = vector.shape_cast %6 : vector<32x256xf32> to vector<2x16x256xf32>
    %cst_5 = arith.constant dense<0xFF800000> : vector<2x256xf32>
    %8 = vector.multi_reduction <maximumf>, %7, %cst_5 [1] : vector<2x16x256xf32> to vector<2x256xf32>
    %c0_6 = arith.constant 0 : index
    %c0_7 = arith.constant 0 : index
    %9 = vector.load %arg5[%c0_6, %c0_7] : memref<1x256xf32, #tpu.memory_space<vmem>>, vector<1x256xf32>
    %10 = vector.broadcast %9 : vector<1x256xf32> to vector<2x256xf32>
    %11 = arith.addf %8, %10 : vector<2x256xf32>
    %cst_8 = arith.constant 0.000000e+00 : f32
    %12 = vector.broadcast %cst_8 : f32 to vector<2x256xf32>
    %13 = arith.maximumf %11, %12 : vector<2x256xf32>
    %14 = math.log1p %13 : vector<2x256xf32>
    %c0_9 = arith.constant 0 : index
    %c0_10 = arith.constant 0 : index
    %15 = vector.load %arg6[%c0_9, %c0_10] : memref<2x256xf32, #tpu.memory_space<vmem>>, vector<2x256xf32>
    tpu.vector_store %arg6[%c0_9, %c0_10], %14 {strides = array<i32>} : memref<2x256xf32, #tpu.memory_space<vmem>>, vector<2x256xf32>,
    return
  }
  func.func @transform_0(%arg0: i32, %arg1: i32) -> (i32, i32) {
    %c0_i32 = arith.constant 0 : i32
    %c0_i32_0 = arith.constant 0 : i32
    return %arg0, %c0_i32 : i32, i32
  }
  func.func @transform_1(%arg0: i32, %arg1: i32) -> (i32, i32) {
    %c0_i32 = arith.constant 0 : i32
    %c0_i32_0 = arith.constant 0 : i32
    return %arg0, %c0_i32 : i32, i32
  }
  func.func @transform_2(%arg0: i32, %arg1: i32) -> (i32, i32) {
    %c0_i32 = arith.constant 0 : i32
    %c0_i32_0 = arith.constant 0 : i32
    return %c0_i32, %arg1 : i32, i32
  }
  func.func @transform_3(%arg0: i32, %arg1: i32) -> (i32, i32) {
    %c0_i32 = arith.constant 0 : i32
    %c0_i32_0 = arith.constant 0 : i32
    return %c0_i32, %arg1 : i32, i32
  }
  func.func @transform_4(%arg0: i32, %arg1: i32) -> (i32, i32) {
    %c0_i32 = arith.constant 0 : i32
    return %arg0, %arg1 : i32, i32
  }
}

</mosaic_0001>

<llo_original>
// kernel: splade_forward.1
$region0: #{splade_forward.1}
  #allocation0 [shape = 'u32[]', space=smem, size = 0x4, offset = 0x4, fixed_abs, tag = 'smem constant byte address 0x4 - core index']
  #allocation1 [shape = 'u32[72,128]{1,0:T(1,128)}', space=vmem, size = 0x9000, scoped, tag = 'internal scratch']
  %s0 = inlined_call_operand.vmem [shape: bf16[32,32], index: 0, kind: input, shape index: {}]
  %s1 = inlined_call_operand.vmem [shape: bf16[32,1], index: 1, kind: input, shape index: {}]
  %s2 = inlined_call_operand.vmem [shape: bf16[32,256], index: 2, kind: input, shape index: {}]
  %s3 = inlined_call_operand.vmem [shape: f32[1,256], index: 3, kind: input, shape index: {}]
  %s4 = inlined_call_operand.hbm [shape: f32[2,256], index: 4, kind: output, shape index: {}]
  %s5 = sld [smem:[#allocation0]]
  $region26: #{splade_forward.1} parent=0
    _
  %s7 = ssub.s32 1, %s5
  %s8 = scalar_select 0, %s7, %s5
  $region1: #{splade_forward.1} parent=0
    #allocation2 [shape = 'u8[2048]{0}', space=vmem, size = 0x800, scoped, tag = 'output window, operand 0, single buffered']
    #allocation3 [shape = 's32[1]{0}', space=sflag, size = 0x4, scoped, tag = 'scoped memory for splade_forward.1']
    %9 = vsyncpa [#allocation3], 0
    // Predicated region
    $region2: #{splade_forward.1} parent=1 // pred_check
      _
    $region3: #{splade_forward.1} parent=1 // pred_check_branch
      %11 = sbr.rel (0) target = $region5
    $region4: #{splade_forward.1} parent=1 // pred_region
      _
    $region5: #{splade_forward.1} parent=1 // pred_fallthru
      _
    // Predicated region
    $region6: #{splade_forward.1} parent=1 // pred_check
      _
    $region7: #{splade_forward.1} parent=1 // pred_check_branch
      %13 = sbr.rel (0) target = $region9
    $region8: #{splade_forward.1} parent=1 // pred_region
      _
    $region9: #{splade_forward.1} parent=1 // pred_fallthru
      _
    // Predicated region
    $region10: #{splade_forward.1} parent=1 // pred_check
      _
    $region11: #{splade_forward.1} parent=1 // pred_check_branch
      %15 = sbr.rel (0) target = $region13
    $region12: #{splade_forward.1} parent=1 // pred_region
      _
    $region13: #{splade_forward.1} parent=1 // pred_fallthru
      _
    // Predicated region
    $region14: #{splade_forward.1} parent=1 // pred_check
      _
    $region15: #{splade_forward.1} parent=1 // pred_check_branch
      %17 = sbr.rel (0) target = $region17
    $region16: #{splade_forward.1} parent=1 // pred_region
      _
    $region17: #{splade_forward.1} parent=1 // pred_fallthru
      _
    %v19 = vld [vmem:[%s0] sm:$0xf]
    %v20 = vld [vmem:[%s0 + $0x4] sm:$0xf]
    %v21 = vld [vmem:[%s0 + $0x8] sm:$0xf]
    %v22 = vld [vmem:[%s0 + $0xc] sm:$0xf]
    %v23 = vld [vmem:[%s2] sm:$0xff]
    %v24 = vld [vmem:[%s2 + $0x8] sm:$0xff]
    %v25 = vld [vmem:[%s2 + $0x10] sm:$0xff]
    %v26 = vld [vmem:[%s2 + $0x18] sm:$0xff]
    %v27 = vld [vmem:[%s1] sm:$0xf]
    %v28 = vld [vmem:[%s1 + $0x4] sm:$0xf]
    %v29 = vld [vmem:[%s1 + $0x8] sm:$0xf]
    %v30 = vld [vmem:[%s1 + $0xc] sm:$0xf]
    %v31 = vunpack.c.l.bf16 %v27
    %v32 = vunpack.c.l.bf16 %v28
    %v33 = vunpack.c.l.bf16 %v29
    %v34 = vunpack.c.l.bf16 %v30
    %36 = vset.pattern.permute.xlu0 0
    %37 = vperm.xlu0 %36, %v31
    %v38 = vpop.permute.xlu0 %37
    %41 = vset.pattern.permute.xlu0 0
    %42 = vperm.xlu0 %41, %v32
    %v43 = vpop.permute.xlu0 %42
    %46 = vset.pattern.permute.xlu0 0
    %47 = vperm.xlu0 %46, %v33
    %v48 = vpop.permute.xlu0 %47
    %51 = vset.pattern.permute.xlu0 0
    %52 = vperm.xlu0 %51, %v34
    %v53 = vpop.permute.xlu0 %52
    %v59 = vunpack.c.l.b16 %v19
    %v60 = vunpack.c.l.b16 %v20
    %v61 = vunpack.c.l.b16 %v21
    %v62 = vunpack.c.l.b16 %v22
    %v63 = vpack.c.b16 %v60, %v59
    %v64 = vpack.c.b16 %v62, %v61
    %v69 = vunpack.c.l.b16 %v23
    %v70 = vunpack.c.h.b16 %v23
    %v71 = vunpack.c.l.b16 %v24
    %v72 = vunpack.c.h.b16 %v24
    %v73 = vunpack.c.l.b16 %v25
    %v74 = vunpack.c.h.b16 %v25
    %v75 = vunpack.c.l.b16 %v26
    %v76 = vunpack.c.h.b16 %v26
    %v77 = vpack.c.b16 %v71, %v69
    %v78 = vpack.c.b16 %v72, %v70
    %v79 = vpack.c.b16 %v75, %v73
    %v80 = vpack.c.b16 %v76, %v74
    %vm85 = vcmask 261120
    %v87 = vsel %vm85, %v63, 0
    %v90 = vsel %vm85, %v64, 0
    %92 = vmatpush.bf16.msra.mxu0 0
    %93 = vmatpush.bf16.msra.mxu0 0
    %94 = vmatpush.bf16.msra.mxu0 0
    %95 = vmatpush.bf16.msra.mxu0 0
    %96 = vmatpush.bf16.msra.mxu0 0
    %97 = vmatpush.bf16.msra.mxu0 0
    %98 = vmatpush.bf16.msra.mxu0 %v79
    %99 = vmatpush.bf16.msra.mxu0 %v77
    %100 = vmatmul.bf16.gmra.mxu0 %v87
    %v101 = vpop.f32.mrf.mxu0
    %v102 = vadd.f32 %v38, %v101
    %v103 = vpop.f32.mrf.mxu0
    %v104 = vadd.f32 %v43, %v103
    %105 = vmatmul.bf16.gmra.mxu0 %v90
    %v106 = vpop.f32.mrf.mxu0
    %v107 = vadd.f32 %v48, %v106
    %v108 = vpop.f32.mrf.mxu0
    %v109 = vadd.f32 %v53, %v108
    %110 = vdwg.mxu0
    %111 = vmatpush.bf16.msra.mxu0 0
    %112 = vmatpush.bf16.msra.mxu0 0
    %113 = vmatpush.bf16.msra.mxu0 0
    %114 = vmatpush.bf16.msra.mxu0 0
    %115 = vmatpush.bf16.msra.mxu0 0
    %116 = vmatpush.bf16.msra.mxu0 0
    %117 = vmatpush.bf16.msra.mxu0 %v80
    %118 = vmatpush.bf16.msra.mxu0 %v78
    %119 = vmatmul.bf16.gmra.mxu0 %v87
    %v120 = vpop.f32.mrf.mxu0
    %v121 = vadd.f32 %v38, %v120
    %v122 = vpop.f32.mrf.mxu0
    %v123 = vadd.f32 %v43, %v122
    %124 = vmatmul.bf16.gmra.mxu0 %v90
    %v125 = vpop.f32.mrf.mxu0
    %v126 = vadd.f32 %v48, %v125
    %v127 = vpop.f32.mrf.mxu0
    %v128 = vadd.f32 %v53, %v127
    %129 = vdwg.mxu0
    %v130 = vmax.f32 %v102, %v104
    %v131 = vrot.slane %v130, 4
    %v132 = vmax.f32 %v130, %v131
    %v133 = vrot.slane %v132, 2
    %v134 = vmax.f32 %v132, %v133
    %v135 = vrot.slane %v134, 1
    %v136 = vmax.f32 %v134, %v135
    %v137 = vmax.f32 %v121, %v123
    %v138 = vrot.slane %v137, 4
    %v139 = vmax.f32 %v137, %v138
    %v140 = vrot.slane %v139, 2
    %v141 = vmax.f32 %v139, %v140
    %v142 = vrot.slane %v141, 1
    %v143 = vmax.f32 %v141, %v142
    %v144 = vmax.f32 %v107, %v109
    %v145 = vrot.slane %v144, 4
    %v146 = vmax.f32 %v144, %v145
    %v147 = vrot.slane %v146, 2
    %v148 = vmax.f32 %v146, %v147
    %v149 = vrot.slane %v148, 1
    %v150 = vmax.f32 %v148, %v149
    %v151 = vmax.f32 %v126, %v128
    %v152 = vrot.slane %v151, 4
    %v153 = vmax.f32 %v151, %v152
    %v154 = vrot.slane %v153, 2
    %v155 = vmax.f32 %v153, %v154
    %v156 = vrot.slane %v155, 1
    %v157 = vmax.f32 %v155, %v156
    %v158 = vld [vmem:[%s3] sm:$0x3]
    %v160 = vperm.slane %v158, 0
    %v161 = vperm.slane %v158, 1
    %v164 = vadd.f32 %v136, %v160
    %v165 = vadd.f32 %v143, %v161
    %v166 = vadd.f32 %v150, %v160
    %v167 = vadd.f32 %v157, %v161
    %v168 = vmax.f32 %v164, 0.0
    %v169 = vmax.f32 %v165, 0.0
    %v170 = vmax.f32 %v166, 0.0
    %v171 = vmax.f32 %v167, 0.0
    %v172 = vadd.f32 %v168, 1.0
    %v173 = vlog2.pop %v172
    %v174 = vmul.f32 %v173, 0.6931472
    %v175 = vmul.f32 -0.5, %v168
    %v176 = vadd.f32 %v175, 1.0
    %v177 = vmul.f32 %v176, %v168
    %v178 = vand.u32 2147483647, %v168
    %vm179 = vcmp.lt.f32.partialorder %v178, 0.0004427343
    %v180 = vsel %vm179, %v177, %v174
    %v181 = vadd.f32 %v169, 1.0
    %v182 = vlog2.pop %v181
    %v183 = vmul.f32 %v182, 0.6931472
    %v184 = vmul.f32 -0.5, %v169
    %v185 = vadd.f32 %v184, 1.0
    %v186 = vmul.f32 %v185, %v169
    %v187 = vand.u32 2147483647, %v169
    %vm188 = vcmp.lt.f32.partialorder %v187, 0.0004427343
    %v189 = vsel %vm188, %v186, %v183
    %v190 = vadd.f32 %v170, 1.0
    %v191 = vlog2.pop %v190
    %v192 = vmul.f32 %v191, 0.6931472
    %v193 = vmul.f32 -0.5, %v170
    %v194 = vadd.f32 %v193, 1.0
    %v195 = vmul.f32 %v194, %v170
    %v196 = vand.u32 2147483647, %v170
    %vm197 = vcmp.lt.f32.partialorder %v196, 0.0004427343
    %v198 = vsel %vm197, %v195, %v192
    %v199 = vadd.f32 %v171, 1.0
    %v200 = vlog2.pop %v199
    %v201 = vmul.f32 %v200, 0.6931472
    %v202 = vmul.f32 -0.5, %v171
    %v203 = vadd.f32 %v202, 1.0
    %v204 = vmul.f32 %v203, %v171
    %v205 = vand.u32 2147483647, %v171
    %vm206 = vcmp.lt.f32.partialorder %v205, 0.0004427343
    %v207 = vsel %vm206, %v204, %v201
    %v212 = vrot.slane %v189, 6
    %v213 = vrot.slane %v207, 6
    %vm214 = vcmask 1041408
    %v215 = vsel %vm214, %v180, %v212
    %v216 = vsel %vm214, %v198, %v213
    %vm217 = vcmask 1044484
    %v218 = vsel %vm217, %v215, %v215
    %vm219 = vcmask 1046534
    %v220 = vsel %vm219, %v215, %v218
    %v221 = vrot.slane %v216, 7
    %vm222 = vcmask 1041409
    %v223 = vsel %vm222, %v221, %v220
    %vm224 = vcmask 1043459
    %v225 = vsel %vm224, %v221, %v223
    %vm226 = vcmask 1045509
    %v227 = vsel %vm226, %v221, %v225
    %vm228 = vcmask 1047559
    %v229 = vsel %vm228, %v221, %v227
    %231 = vst [vmem:[#allocation2] sm:$0xf] %v229
    // Predicated region
    $region18: #{splade_forward.1} parent=1 // pred_check
      _
    $region19: #{splade_forward.1} parent=1 // pred_check_branch
      %233 = sbr.rel (0) target = $region21
    $region20: #{splade_forward.1} parent=1 // pred_region
      %235 = vsyncadd [#allocation3], 0
      %s237 = sshll.u32 [#allocation2], 4
      %s238 = int_to_ptr.vmem [resolvable:$true] %s237
      %s239 = sshll.u32 %s4, 4
      %s240 = int_to_ptr.hbm [resolvable:$true] %s239
      %242 = dma.vmem_to_hbm [thread:$0]  %s238, 64, %s240, [#allocation3]
    $region21: #{splade_forward.1} parent=1 // pred_fallthru
      _
    // Predicated region
    $region22: #{splade_forward.1} parent=1 // pred_check
      _
    $region23: #{splade_forward.1} parent=1 // pred_check_branch
      %244 = sbr.rel (0) target = $region25
    $region24: #{splade_forward.1} parent=1 // pred_region
      %246 = dma.done [#allocation3], 64
    $region25: #{splade_forward.1} parent=1 // pred_fallthru
      _
    %247 = vsyncpa [#allocation3], 1

</llo_original>
